<compile_context>
chip_gen: v7x
topology: tpu7x:2x2x1
jax: 0.10.0
libtpu: 0.0.40
codegen_flags: <defaults>
</compile_context>

<pallas_src>
import functools

import jax
import jax.numpy as jnp
from jax.experimental import pallas as pl
from jax.experimental.pallas import tpu as pltpu

NUM_CLASSES = 41
MAX_TILE_HW = 2048  # pixels (lanes) per grid step; multiple of 128


def _seg_ce_kernel(logits_ref, label_ref, weight_ref, num_ref, den_ref,
                   *, hw, tile_hw, mask_tail):
    """Accumulates lane-wise weighted-NLL numerator / weight denominator.

    logits_ref: (1, C, T) f32-castable VMEM   (T = tile_hw pixels on lanes)
    label_ref : (1, 1, T) int32 VMEM
    weight_ref: (C, 1)    f32 VMEM            (resident, never re-DMAed)
    num_ref   : (1, 1, T) f32 output accumulator (resident across hw axis)
    den_ref   : (1, 1, T) f32 output accumulator
    """
    t = pl.program_id(1)

    @pl.when(t == 0)
    def _():
        num_ref[...] = jnp.zeros_like(num_ref)
        den_ref[...] = jnp.zeros_like(den_ref)

    x = logits_ref[0].astype(jnp.float32)     # (C, T)
    lab = label_ref[0]                        # (1, T) int32
    w = weight_ref[...]                       # (C, 1) f32
    c = x.shape[0]

    # NOTE: PyTorch would raise on negative labels; we simply mask them out.
    valid = jnp.logical_and(lab >= 0, lab < c)            # (1, T)

    if mask_tail:
        # Last tile overhangs the array: mask lanes whose global pixel index
        # is past HW. Also zero the garbage logits so exp/log stay finite.
        lane = jax.lax.broadcasted_iota(jnp.int32, (1, tile_hw), 1)
        pix_valid = (t * tile_hw + lane) < hw              # (1, T)
        valid = jnp.logical_and(valid, pix_valid)
        x = jnp.where(pix_valid, x, 0.0)

    # One-hot over the class (sublane) axis; invalid pixels get an all-zero
    # column, so they contribute 0 to both numerator and denominator.
    cls = jax.lax.broadcasted_iota(jnp.int32, (c, tile_hw), 0)   # (C, T)
    onehot = jnp.logical_and(cls == lab, valid).astype(jnp.float32)

    # Numerically stable log-sum-exp over the class axis (sublane reduction).
    m = jnp.max(x, axis=0, keepdims=True)                         # (1, T)
    lse = m + jnp.log(jnp.sum(jnp.exp(x - m), axis=0, keepdims=True))

    sel_logit = jnp.sum(x * onehot, axis=0, keepdims=True)        # x_i[y_i]
    sel_w = jnp.sum(w * onehot, axis=0, keepdims=True)            # w[y_i]

    num_ref[0] += sel_w * (lse - sel_logit)
    den_ref[0] += sel_w


@jax.jit
def seg_cross_entropy_metric(out, label, weight):
    """out: (N, C, H, W) logits; label: (N, 1, H, W) int; weight: (C,) f32."""
    n, c, h, w = out.shape
    hw = h * w

    # Free reshapes only (no transpose, no pad -> no extra HBM traffic).
    logits = out.reshape(n, c, hw)
    labels = label.reshape(n, 1, hw).astype(jnp.int32)
    wcol = weight.astype(jnp.float32).reshape(c, 1)

    if hw >= MAX_TILE_HW:
        tile_hw = MAX_TILE_HW                  # multiple of 128
    else:
        tile_hw = hw                           # full-extent block (always legal)
    n_hw_tiles = pl.cdiv(hw, tile_hw)
    mask_tail = (hw % tile_hw) != 0

    kernel = functools.partial(
        _seg_ce_kernel, hw=hw, tile_hw=tile_hw, mask_tail=mask_tail)

    num, den = pl.pallas_call(
        kernel,
        out_shape=(
            jax.ShapeDtypeStruct((n, 1, tile_hw), jnp.float32),
            jax.ShapeDtypeStruct((n, 1, tile_hw), jnp.float32),
        ),
        grid_spec=pltpu.PrefetchScalarGridSpec(
            num_scalar_prefetch=0,
            grid=(n, n_hw_tiles),
            in_specs=[
                pl.BlockSpec((1, c, tile_hw), lambda i, t: (i, 0, t)),
                pl.BlockSpec((1, 1, tile_hw), lambda i, t: (i, 0, t)),
                pl.BlockSpec((c, 1), lambda i, t: (0, 0)),
            ],
            out_specs=[
                pl.BlockSpec((1, 1, tile_hw), lambda i, t: (i, 0, 0)),
                pl.BlockSpec((1, 1, tile_hw), lambda i, t: (i, 0, 0)),
            ],
        ),
        compiler_params=pltpu.CompilerParams(
            dimension_semantics=("parallel", "arbitrary")),
    )(logits, labels, wcol)

    # Final cross-lane / cross-image reduction is tiny; do it in plain JAX.
    return (jnp.sum(num) / jnp.sum(den)).astype(jnp.float32)


def _reference(out, label, weight):
    """Plain-JAX reference mirroring nn.CrossEntropyLoss(weight, ignore_index=255)."""
    c = out.shape[1]
    logits = jnp.transpose(out, (0, 2, 3, 1)).reshape(-1, c).astype(jnp.float32)
    labels = jnp.transpose(label, (0, 2, 3, 1)).reshape(-1)
    valid = (labels >= 0) & (labels < c)
    lab = jnp.where(valid, labels, 0)
    logp = jax.nn.log_softmax(logits, axis=-1)
    nll = -jnp.take_along_axis(logp, lab[:, None], axis=-1)[:, 0]
    wsel = weight[lab]
    vf = valid.astype(jnp.float32)
    return jnp.sum(vf * wsel * nll) / jnp.sum(vf * wsel)


if __name__ == "__main__":
    key = jax.random.PRNGKey(0)

    # NYU weights: ones(41) with weight[0] = 0.1 (deterministic, matches __init__)
    weight = jnp.ones((NUM_CLASSES,), dtype=jnp.float32).at[0].set(0.1)

    # Two configs: single-tile path (16x16) and multi-tile + tail-mask path (48x48).
    for (N, H, W) in [(2, 16, 16), (2, 48, 48)]:
        k1, k2, k3 = jax.random.split(jax.random.fold_in(key, H * W), 3)

        out = jax.random.normal(k1, (N, NUM_CLASSES, H, W), dtype=jnp.float32)
        # labels in [0, 45): values >= 41 get masked out (like ignore regions)
        label = jax.random.randint(k2, (N, 1, H, W), 0, 45, dtype=jnp.int32)
        # sprinkle some explicit 255 ignore labels
        ignore_mask = jax.random.bernoulli(k3, 0.05, (N, 1, H, W))
        label = jnp.where(ignore_mask, 255, label)

        err = seg_cross_entropy_metric(out, label, weight)
        err = jax.block_until_ready(err)

        ref = _reference(out, label, weight)
        assert jnp.allclose(err, ref, rtol=1e-5, atol=1e-5), (H, W, err, ref)

    print("KERNEL_OK")
</pallas_src>

<mosaic_0001>
module attributes {stable_mosaic.version = 11 : i64} {
  func.func @_seg_ce_kernel(%arg0: i32, %arg1: i32, %arg2: memref<1x41x256xf32, #tpu.memory_space<vmem>>, %arg3: memref<1x1x256xi32, #tpu.memory_space<vmem>>, %arg4: memref<41x1xf32, #tpu.memory_space<vmem>>, %arg5: memref<1x1x256xf32, #tpu.memory_space<vmem>>, %arg6: memref<1x1x256xf32, #tpu.memory_space<vmem>>) attributes {dimension_semantics = [#tpu.dimension_semantics<parallel>, #tpu.dimension_semantics<arbitrary>], iteration_bounds = array<i64: 2, 1>, scalar_prefetch = 0 : i64, scratch_operands = 0 : i64, tpu.core_type = #tpu.core_type<tc>, window_params = [{transform_indices = @transform_0, window_bounds = array<i64: 1, 41, 256>}, {transform_indices = @transform_1, window_bounds = array<i64: 1, 1, 256>}, {pipeline_mode = #tpu.pipeline_mode<synchronous>, transform_indices = @transform_2, window_bounds = array<i64: 41, 1>}, {transform_indices = @transform_3, window_bounds = array<i64: 1, 1, 256>}, {transform_indices = @transform_4, window_bounds = array<i64: 1, 1, 256>}]} {
    %c0_i32 = arith.constant 0 : i32
    %0 = arith.cmpi eq, %arg1, %c0_i32 : i32
    %1 = arith.extui %0 : i1 to i32
    %c0_i32_0 = arith.constant 0 : i32
    %2 = arith.cmpi ne, %1, %c0_i32_0 : i32
    scf.if %2 {
      %cst_24 = arith.constant 0.000000e+00 : f32
      %50 = vector.broadcast %cst_24 : f32 to vector<1x1x256xf32>
      %c0_25 = arith.constant 0 : index
      %c0_26 = arith.constant 0 : index
      %c0_27 = arith.constant 0 : index
      %51 = vector.load %arg5[%c0_25, %c0_26, %c0_27] : memref<1x1x256xf32, #tpu.memory_space<vmem>>, vector<1x1x256xf32>
      tpu.vector_store %arg5[%c0_25, %c0_26, %c0_27], %50 {strides = array<i32>} : memref<1x1x256xf32, #tpu.memory_space<vmem>>, vector<1x1x256xf32>,
      %cst_28 = arith.constant 0.000000e+00 : f32
      %52 = vector.broadcast %cst_28 : f32 to vector<1x1x256xf32>
      %c0_29 = arith.constant 0 : index
      %c0_30 = arith.constant 0 : index
      %c0_31 = arith.constant 0 : index
      %53 = vector.load %arg6[%c0_29, %c0_30, %c0_31] : memref<1x1x256xf32, #tpu.memory_space<vmem>>, vector<1x1x256xf32>
      tpu.vector_store %arg6[%c0_29, %c0_30, %c0_31], %52 {strides = array<i32>} : memref<1x1x256xf32, #tpu.memory_space<vmem>>, vector<1x1x256xf32>,
    } else {
    }
    %c0 = arith.constant 0 : index
    %c0_1 = arith.constant 0 : index
    %c0_2 = arith.constant 0 : index
    %3 = vector.load %arg2[%c0, %c0_1, %c0_2] : memref<1x41x256xf32, #tpu.memory_space<vmem>>, vector<1x41x256xf32>
    %4 = vector.shape_cast %3 : vector<1x41x256xf32> to vector<41x256xf32>
    %c0_3 = arith.constant 0 : index
    %c0_4 = arith.constant 0 : index
    %c0_5 = arith.constant 0 : index
    %5 = vector.load %arg3[%c0_3, %c0_4, %c0_5] : memref<1x1x256xi32, #tpu.memory_space<vmem>>, vector<1x1x256xi32>
    %6 = vector.shape_cast %5 : vector<1x1x256xi32> to vector<1x256xi32>
    %c0_6 = arith.constant 0 : index
    %c0_7 = arith.constant 0 : index
    %7 = vector.load %arg4[%c0_6, %c0_7] : memref<41x1xf32, #tpu.memory_space<vmem>>, vector<41x1xf32>
    %c0_i32_8 = arith.constant 0 : i32
    %8 = vector.broadcast %c0_i32_8 : i32 to vector<1x256xi32>
    %9 = arith.cmpi sge, %6, %8 : vector<1x256xi32>
    %c41_i32 = arith.constant 41 : i32
    %10 = vector.broadcast %c41_i32 : i32 to vector<1x256xi32>
    %11 = arith.cmpi slt, %6, %10 : vector<1x256xi32>
    %12 = arith.andi %9, %11 : vector<1x256xi1>
    %13 = tpu.iota {dimensions = array<i32: 0>} : vector<41x256xi32>
    %14 = vector.broadcast %6 : vector<1x256xi32> to vector<41x256xi32>
    %15 = arith.cmpi eq, %13, %14 : vector<41x256xi32>
    %16 = vector.broadcast %12 : vector<1x256xi1> to vector<41x256xi1>
    %17 = arith.andi %15, %16 : vector<41x256xi1>
    %18 = arith.extui %17 : vector<41x256xi1> to vector<41x256xi32>
    %19 = arith.sitofp %18 : vector<41x256xi32> to vector<41x256xf32>
    %cst = arith.constant dense<0xFF800000> : vector<256xf32>
    %20 = vector.multi_reduction <maximumf>, %4, %cst [0] : vector<41x256xf32> to vector<256xf32>
    %21 = vector.shape_cast %20 : vector<256xf32> to vector<1x256xf32>
    %22 = vector.broadcast %21 : vector<1x256xf32> to vector<41x256xf32>
    %23 = arith.subf %4, %22 : vector<41x256xf32>
    %24 = math.exp %23 : vector<41x256xf32>
    %cst_9 = arith.constant dense<0.000000e+00> : vector<256xf32>
    %25 = vector.multi_reduction <add>, %24, %cst_9 [0] : vector<41x256xf32> to vector<256xf32>
    %26 = vector.shape_cast %25 : vector<256xf32> to vector<1x256xf32>
    %27 = math.log %26 : vector<1x256xf32>
    %28 = arith.addf %21, %27 : vector<1x256xf32>
    %29 = arith.mulf %4, %19 : vector<41x256xf32>
    %cst_10 = arith.constant dense<0.000000e+00> : vector<256xf32>
    %30 = vector.multi_reduction <add>, %29, %cst_10 [0] : vector<41x256xf32> to vector<256xf32>
    %31 = vector.shape_cast %30 : vector<256xf32> to vector<1x256xf32>
    %32 = vector.broadcast %7 : vector<41x1xf32> to vector<41x256xf32>
    %33 = arith.mulf %32, %19 : vector<41x256xf32>
    %cst_11 = arith.constant dense<0.000000e+00> : vector<256xf32>
    %34 = vector.multi_reduction <add>, %33, %cst_11 [0] : vector<41x256xf32> to vector<256xf32>
    %35 = vector.shape_cast %34 : vector<256xf32> to vector<1x256xf32>
    %c0_12 = arith.constant 0 : index
    %c0_13 = arith.constant 0 : index
    %c0_14 = arith.constant 0 : index
    %36 = vector.load %arg5[%c0_12, %c0_13, %c0_14] : memref<1x1x256xf32, #tpu.memory_space<vmem>>, vector<1x1x256xf32>
    %37 = vector.shape_cast %36 : vector<1x1x256xf32> to vector<1x256xf32>
    %38 = arith.subf %28, %31 : vector<1x256xf32>
    %39 = arith.mulf %35, %38 : vector<1x256xf32>
    %40 = arith.addf %37, %39 : vector<1x256xf32>
    %c0_15 = arith.constant 0 : index
    %c0_16 = arith.constant 0 : index
    %c0_17 = arith.constant 0 : index
    %41 = vector.load %arg5[%c0_15, %c0_16, %c0_17] : memref<1x1x256xf32, #tpu.memory_space<vmem>>, vector<1x1x256xf32>
    %42 = vector.shape_cast %41 : vector<1x1x256xf32> to vector<1x256xf32>
    %43 = vector.shape_cast %40 : vector<1x256xf32> to vector<1x1x256xf32>
    tpu.vector_store %arg5[%c0_15, %c0_16, %c0_17], %43 {strides = array<i32>} : memref<1x1x256xf32, #tpu.memory_space<vmem>>, vector<1x1x256xf32>,
    %c0_18 = arith.constant 0 : index
    %c0_19 = arith.constant 0 : index
    %c0_20 = arith.constant 0 : index
    %44 = vector.load %arg6[%c0_18, %c0_19, %c0_20] : memref<1x1x256xf32, #tpu.memory_space<vmem>>, vector<1x1x256xf32>
    %45 = vector.shape_cast %44 : vector<1x1x256xf32> to vector<1x256xf32>
    %46 = arith.addf %45, %35 : vector<1x256xf32>
    %c0_21 = arith.constant 0 : index
    %c0_22 = arith.constant 0 : index
    %c0_23 = arith.constant 0 : index
    %47 = vector.load %arg6[%c0_21, %c0_22, %c0_23] : memref<1x1x256xf32, #tpu.memory_space<vmem>>, vector<1x1x256xf32>
    %48 = vector.shape_cast %47 : vector<1x1x256xf32> to vector<1x256xf32>
    %49 = vector.shape_cast %46 : vector<1x256xf32> to vector<1x1x256xf32>
    tpu.vector_store %arg6[%c0_21, %c0_22, %c0_23], %49 {strides = array<i32>} : memref<1x1x256xf32, #tpu.memory_space<vmem>>, vector<1x1x256xf32>,
    return
  }
  func.func @transform_0(%arg0: i32, %arg1: i32) -> (i32, i32, i32) {
    %c0_i32 = arith.constant 0 : i32
    %c0_i32_0 = arith.constant 0 : i32
    return %arg0, %c0_i32, %arg1 : i32, i32, i32
  }
  func.func @transform_1(%arg0: i32, %arg1: i32) -> (i32, i32, i32) {
    %c0_i32 = arith.constant 0 : i32
    %c0_i32_0 = arith.constant 0 : i32
    return %arg0, %c0_i32, %arg1 : i32, i32, i32
  }
  func.func @transform_2(%arg0: i32, %arg1: i32) -> (i32, i32) {
    %c0_i32 = arith.constant 0 : i32
    %c0_i32_0 = arith.constant 0 : i32
    %c0_i32_1 = arith.constant 0 : i32
    return %c0_i32, %c0_i32_0 : i32, i32
  }
  func.func @transform_3(%arg0: i32, %arg1: i32) -> (i32, i32, i32) {
    %c0_i32 = arith.constant 0 : i32
    %c0_i32_0 = arith.constant 0 : i32
    %c0_i32_1 = arith.constant 0 : i32
    return %arg0, %c0_i32, %c0_i32_0 : i32, i32, i32
  }
  func.func @transform_4(%arg0: i32, %arg1: i32) -> (i32, i32, i32) {
    %c0_i32 = arith.constant 0 : i32
    %c0_i32_0 = arith.constant 0 : i32
    %c0_i32_1 = arith.constant 0 : i32
    return %arg0, %c0_i32, %c0_i32_0 : i32, i32, i32
  }
}

</mosaic_0001>

<llo_original>
// kernel: seg_cross_entropy_metric.1
$region0: #{seg_cross_entropy_metric.1}
  #allocation0 [shape = 'u32[]', space=smem, size = 0x4, offset = 0x4, fixed_abs, tag = 'smem constant byte address 0x4 - core index']
  #allocation1 [shape = 'u32[144,128]{1,0:T(1,128)}', space=vmem, size = 0x12000, scoped, tag = 'internal scratch']
  %s0 = inlined_call_operand.vmem [shape: f32[2,41,256], index: 0, kind: input, shape index: {}]
  %s1 = inlined_call_operand.vmem [shape: s32[2,1,256], index: 1, kind: input, shape index: {}]
  %s2 = inlined_call_operand.vmem [shape: f32[41,1], index: 2, kind: input, shape index: {}]
  %s3 = inlined_call_operand.vmem [shape: f32[2,1,256], index: 3, kind: output, shape index: {0}]
  %s4 = inlined_call_operand.vmem [shape: f32[2,1,256], index: 4, kind: output, shape index: {1}]
  %5 = xla_tuple %s3, %s4
  %s6 = sld [smem:[#allocation0]]
  $region57: #{seg_cross_entropy_metric.1} parent=0
    _
  %s8 = ssub.s32 1, %s6
  %s9 = scalar_select 0, %s8, %s6
  loop: start=0, step=1, limit=4
  $region2: #{seg_cross_entropy_metric.1} parent=0 // loop_pre_header
    _
  $region3: #{seg_cross_entropy_metric.1} parent=0 // loop_header
    %s11 = sphi 0, %s15
    %p12 = scmp.ge.s32.totalorder %s11, 4
    %s18 = sphi 0, %s30
    %s19 = sphi 0, %s26
    %s20 = sphi 0, %s18
    %s21 = sphi 0, %s19
    %s22 = sphi 0, %s20
    %s23 = sphi 0, %s21
    %s35 = sphi 0, %s37
    %s38 = sphi 0, %s35
    %s39 = sphi 0, %s38
    %s55 = sphi 0, %s39
    %s63 = sphi 0, %s65
    %s66 = sphi 0, %s63
    %s67 = sphi 0, %s66
    %s83 = sphi 0, %s67
    %s87 = sphi 0, %s87
    %s89 = sphi 0, %s87
    %s90 = sphi 0, %s89
    %s104 = sphi 0, %s90
    %s110 = sphi 0, %s112
    %s113 = sphi 0, %s110
    %s114 = sphi 0, %s113
    %s130 = sphi 0, %s114
    %s136 = sphi 0, %s138
    %s139 = sphi 0, %s136
    %s140 = sphi 0, %s139
    %s156 = sphi 0, %s140
  $region4: #{seg_cross_entropy_metric.1} parent=0 // loop_header_branch
    %14 = sbr.rel (%p12) target = $region8
  $region5: #{seg_cross_entropy_metric.1} parent=0 // loop_body
    %s16 = ssub.s32 %s11, 1
    %s17 = ssub.s32 %s11, 2
    %s24 = sadd.s32 1, %s19
    %p25 = scmp.ge.s32.totalorder %s24, 1
    %s26 = scalar_select %p25, 0, %s24
    %s27 = sadd.s32 1, %s18
    %s28 = scalar_select %p25, %s27, %s18
    %p29 = scmp.ge.s32.totalorder %s28, 2
    %s30 = scalar_select %p29, 0, %s28
    %s31 = ssub.s32 %s18, %s30
    %s32 = ssub.s32 %s19, %s26
    %s33 = sor.u32 %s31, %s32
    %p34 = scmp.eq.s32.totalorder %s33, 0
    %s36 = sadd.s32 %s35, 1
    %s37 = scalar_select %p34, %s35, %s36
    %p40 = pneg %p34
    %p41 = scmp.eq.s32.totalorder %s11, 1
    %p42 = por %p40, %p41
    %p43 = scmp.ne.s32.totalorder %s35, %s38
    %p44 = scmp.eq.s32.totalorder %s11, 0
    %p45 = por %p43, %p44
    %p46 = scmp.ne.s32.totalorder %s35, %s38
    %p47 = scmp.eq.s32.totalorder %s16, 1
    %p48 = por %p46, %p47
    %p49 = scmp.ne.s32.totalorder %s38, %s39
    %p50 = scmp.eq.s32.totalorder %s16, 0
    %p51 = por %p49, %p50
    %p52 = scmp.ne.s32.totalorder %s38, %s39
    %p53 = scmp.eq.s32.totalorder %s17, 1
    %p54 = por %p52, %p53
    %p56 = scmp.ne.s32.totalorder %s39, %s55
    %p57 = scmp.eq.s32.totalorder %s17, 0
    %p58 = por %p56, %p57
    %s59 = ssub.s32 %s18, %s30
    %s60 = ssub.s32 %s19, %s26
    %s61 = sor.u32 %s59, %s60
    %p62 = scmp.eq.s32.totalorder %s61, 0
    %s64 = sadd.s32 %s63, 1
    %s65 = scalar_select %p62, %s63, %s64
    %p68 = pneg %p62
    %p69 = scmp.eq.s32.totalorder %s11, 1
    %p70 = por %p68, %p69
    %p71 = scmp.ne.s32.totalorder %s63, %s66
    %p72 = scmp.eq.s32.totalorder %s11, 0
    %p73 = por %p71, %p72
    %p74 = scmp.ne.s32.totalorder %s63, %s66
    %p75 = scmp.eq.s32.totalorder %s16, 1
    %p76 = por %p74, %p75
    %p77 = scmp.ne.s32.totalorder %s66, %s67
    %p78 = scmp.eq.s32.totalorder %s16, 0
    %p79 = por %p77, %p78
    %p80 = scmp.ne.s32.totalorder %s66, %s67
    %p81 = scmp.eq.s32.totalorder %s17, 1
    %p82 = por %p80, %p81
    %p84 = scmp.ne.s32.totalorder %s67, %s83
    %p85 = scmp.eq.s32.totalorder %s17, 0
    %p86 = por %p84, %p85
    %s88 = sadd.s32 %s87, 1
    %p91 = scmp.eq.s32.totalorder %s11, 1
    %p92 = scmp.ne.s32.totalorder %s87, %s89
    %p93 = scmp.eq.s32.totalorder %s11, 0
    %p94 = por %p92, %p93
    %p95 = scmp.ne.s32.totalorder %s87, %s89
    %p96 = scmp.eq.s32.totalorder %s16, 1
    %p97 = por %p95, %p96
    %p98 = scmp.ne.s32.totalorder %s89, %s90
    %p99 = scmp.eq.s32.totalorder %s16, 0
    %p100 = por %p98, %p99
    %p101 = scmp.ne.s32.totalorder %s89, %s90
    %p102 = scmp.eq.s32.totalorder %s17, 1
    %p103 = por %p101, %p102
    %p105 = scmp.ne.s32.totalorder %s90, %s104
    %p106 = scmp.eq.s32.totalorder %s17, 0
    %p107 = por %p105, %p106
    %s108 = ssub.s32 %s18, %s30
    %p109 = scmp.eq.s32.totalorder %s108, 0
    %s111 = sadd.s32 %s110, 1
    %s112 = scalar_select %p109, %s110, %s111
    %p115 = pneg %p109
    %p116 = scmp.eq.s32.totalorder %s11, 1
    %p117 = por %p115, %p116
    %p118 = scmp.ne.s32.totalorder %s110, %s113
    %p119 = scmp.eq.s32.totalorder %s11, 0
    %p120 = por %p118, %p119
    %p121 = scmp.ne.s32.totalorder %s110, %s113
    %p122 = scmp.eq.s32.totalorder %s16, 1
    %p123 = por %p121, %p122
    %p124 = scmp.ne.s32.totalorder %s113, %s114
    %p125 = scmp.eq.s32.totalorder %s16, 0
    %p126 = por %p124, %p125
    %p127 = scmp.ne.s32.totalorder %s113, %s114
    %p128 = scmp.eq.s32.totalorder %s17, 1
    %p129 = por %p127, %p128
    %p131 = scmp.ne.s32.totalorder %s114, %s130
    %p132 = scmp.eq.s32.totalorder %s17, 0
    %p133 = por %p131, %p132
    %s134 = ssub.s32 %s18, %s30
    %p135 = scmp.eq.s32.totalorder %s134, 0
    %s137 = sadd.s32 %s136, 1
    %s138 = scalar_select %p135, %s136, %s137
    %p141 = pneg %p135
    %p142 = scmp.eq.s32.totalorder %s11, 1
    %p143 = por %p141, %p142
    %p144 = scmp.ne.s32.totalorder %s136, %s139
    %p145 = scmp.eq.s32.totalorder %s11, 0
    %p146 = por %p144, %p145
    %p147 = scmp.ne.s32.totalorder %s136, %s139
    %p148 = scmp.eq.s32.totalorder %s16, 1
    %p149 = por %p147, %p148
    %p150 = scmp.ne.s32.totalorder %s139, %s140
    %p151 = scmp.eq.s32.totalorder %s16, 0
    %p152 = por %p150, %p151
    %p153 = scmp.ne.s32.totalorder %s139, %s140
    %p154 = scmp.eq.s32.totalorder %s17, 1
    %p155 = por %p153, %p154
    %p157 = scmp.ne.s32.totalorder %s140, %s156
    %p158 = scmp.eq.s32.totalorder %s17, 0
    %p159 = por %p157, %p158
    %p160 = scmp.le.s32.totalorder 1, %s11
    %p161 = scmp.lt.s32.totalorder %s11, 3
    %p162 = pnand %p160, %p161
    %p163 = pneg %p162
    // Predicated region
    $region9: #{seg_cross_entropy_metric.1} parent=5 // pred_check
      _
    $region10: #{seg_cross_entropy_metric.1} parent=5 // pred_check_branch
      %165 = sbr.rel (%p162) target = $region12
    $region11: #{seg_cross_entropy_metric.1} parent=5 // pred_region
      %s166 = ssub.s32 %s11, 1
      // Predicated region
      $region13: #{seg_cross_entropy_metric.1} parent=11 // pred_check
        %p167 = pneg %p100
      $region14: #{seg_cross_entropy_metric.1} parent=11 // pred_check_branch
        %169 = sbr.rel (%p167) target = $region16
      $region15: #{seg_cross_entropy_metric.1} parent=11 // pred_region
        _
      $region16: #{seg_cross_entropy_metric.1} parent=11 // pred_fallthru
        _
    $region12: #{seg_cross_entropy_metric.1} parent=5 // pred_fallthru
      _
    %p170 = scmp.lt.s32.totalorder %s11, 2
    // Predicated region
    $region17: #{seg_cross_entropy_metric.1} parent=5 // pred_check
      %p171 = pneg %p170
    $region18: #{seg_cross_entropy_metric.1} parent=5 // pred_check_branch
      %173 = sbr.rel (%p171) target = $region20
    $region19: #{seg_cross_entropy_metric.1} parent=5 // pred_region
      // Predicated region
      $region21: #{seg_cross_entropy_metric.1} parent=19 // pred_check
        %p174 = pneg %p45
      $region22: #{seg_cross_entropy_metric.1} parent=19 // pred_check_branch
        %176 = sbr.rel (%p174) target = $region24
      $region23: #{seg_cross_entropy_metric.1} parent=19 // pred_region
        %s177 = smul.u32 2, %s19
        %p178 = scmp.lt.s32.totalorder %s18, 1
        %s179 = scalar_select %p178, %s18, 1
        %p180 = scmp.lt.s32.totalorder %s177, 1
        %s181 = scalar_select %p180, %s177, 1
        %s182 = smul.addr %s179, 12
        %s183 = sadd.s32 %s181, %s182
        %s184 = smul.addr %s183, 8
        %s185 = scalar_lea.vmem %s0, %s184
        %s186 = smul.u32 2, %s19
      $region24: #{seg_cross_entropy_metric.1} parent=19 // pred_fallthru
        _
      // Predicated region
      $region25: #{seg_cross_entropy_metric.1} parent=19 // pred_check
        %p187 = pneg %p73
      $region26: #{seg_cross_entropy_metric.1} parent=19 // pred_check_branch
        %189 = sbr.rel (%p187) target = $region28
      $region27: #{seg_cross_entropy_metric.1} parent=19 // pred_region
        %s190 = smul.u32 2, %s19
        %p191 = scmp.lt.s32.totalorder %s18, 1
        %s192 = scalar_select %p191, %s18, 1
        %p193 = scmp.lt.s32.totalorder %s190, 1
        %s194 = scalar_select %p193, %s190, 1
        %s195 = smul.addr %s192, 2
        %s196 = sadd.s32 %s194, %s195
        %s197 = scalar_lea.vmem %s1, %s196
        %s198 = smul.u32 2, %s19
      $region28: #{seg_cross_entropy_metric.1} parent=19 // pred_fallthru
        _
    $region20: #{seg_cross_entropy_metric.1} parent=5 // pred_fallthru
      _
    %p199 = scmp.le.s32.totalorder 1, %s11
    %p200 = scmp.lt.s32.totalorder %s11, 3
    %p201 = pnand %p199, %p200
    %p202 = pneg %p201
    // Predicated region
    $region29: #{seg_cross_entropy_metric.1} parent=5 // pred_check
      _
    $region30: #{seg_cross_entropy_metric.1} parent=5 // pred_check_branch
      %204 = sbr.rel (%p201) target = $region32
    $region31: #{seg_cross_entropy_metric.1} parent=5 // pred_region
      %s205 = ssub.s32 %s11, 1
      %s206 = smul.u32 2, %s21
      %p207 = scmp.lt.s32.totalorder %s20, 1
      %s208 = scalar_select %p207, %s20, 1
      %p209 = scmp.lt.s32.totalorder %s206, 1
      %s210 = scalar_select %p209, %s206, 1
      %s211 = smul.addr %s208, 12
      %s212 = sadd.s32 %s210, %s211
      %s213 = smul.addr %s212, 8
      %s214 = scalar_lea.vmem %s0, %s213
      %p215 = pneg %p51
      %p216 = pneg %p48
      %s217 = smul.u32 2, %s21
      %p218 = scmp.lt.s32.totalorder %s20, 1
      %s219 = scalar_select %p218, %s20, 1
      %p220 = scmp.lt.s32.totalorder %s217, 1
      %s221 = scalar_select %p220, %s217, 1
      %s222 = smul.addr %s219, 2
      %s223 = sadd.s32 %s221, %s222
      %s224 = scalar_lea.vmem %s1, %s223
      %p225 = pneg %p79
      %p226 = pneg %p76
      %p227 = pneg %p100
      %p228 = pneg %p97
      %p229 = pneg %p126
      %p230 = pneg %p123
      %p231 = scmp.lt.s32.totalorder %s20, 1
      %s232 = scalar_select %p231, %s20, 1
      %s233 = smul.addr %s232, 2
      %s234 = scalar_lea.vmem %s3, %s233
      %p235 = pneg %p152
      %p236 = pneg %p149
      %p237 = scmp.lt.s32.totalorder %s20, 1
      %s238 = scalar_select %p237, %s20, 1
      %s239 = smul.addr %s238, 2
      %s240 = scalar_lea.vmem %s4, %s239
      %s241 = smul.u32 2, %s21
      %p242 = scmp.lt.s32.totalorder %s20, 1
      %s243 = scalar_select %p242, %s20, 1
      %p244 = scmp.lt.s32.totalorder %s241, 1
      %s245 = scalar_select %p244, %s241, 1
      %s246 = smul.addr %s243, 12
      %s247 = sadd.s32 %s245, %s246
      %s248 = smul.addr %s247, 8
      %s249 = scalar_lea.vmem %s0, %s248
      %s250 = smul.u32 2, %s21
      %s251 = smul.u32 2, %s21
      %p252 = scmp.lt.s32.totalorder %s20, 1
      %s253 = scalar_select %p252, %s20, 1
      %p254 = scmp.lt.s32.totalorder %s251, 1
      %s255 = scalar_select %p254, %s251, 1
      %s256 = smul.addr %s253, 2
      %s257 = sadd.s32 %s255, %s256
      %s258 = scalar_lea.vmem %s1, %s257
      %s259 = smul.u32 2, %s21
      %p260 = scmp.lt.s32.totalorder %s20, 1
      %s261 = scalar_select %p260, %s20, 1
      %s262 = smul.addr %s261, 2
      %s263 = scalar_lea.vmem %s3, %s262
      %p264 = scmp.lt.s32.totalorder %s20, 1
      %s265 = scalar_select %p264, %s20, 1
      %s266 = smul.addr %s265, 2
      %s267 = scalar_lea.vmem %s4, %s266
      %p268 = scmp.eq.s32.totalorder %s21, 0
      // Predicated region
      $region33: #{seg_cross_entropy_metric.1} parent=31 // pred_check
        %p269 = pneg %p268
      $region34: #{seg_cross_entropy_metric.1} parent=31 // pred_check_branch
        %271 = sbr.rel (%p269) target = $region36
      $region35: #{seg_cross_entropy_metric.1} parent=31 // pred_region
        %v272 = vlaneseq
        %vm273 = vcmp.ge.s32.totalorder %v272, 0
        %vm274 = vcmp.lt.s32.totalorder %v272, 256
        %vm275 = vmand %vm273, %vm274
        %276 = vst.msk [vmem:[%s263] sm:$0x3] %vm275, 0.0
        %277 = vst.msk [vmem:[%s267] sm:$0x3] %vm275, 0.0
      $region36: #{seg_cross_entropy_metric.1} parent=31 // pred_fallthru
        _
      %v278 = vld [vmem:[%s249] sm:$0xff]
      %v279 = vld [vmem:[%s249 + $0x8] sm:$0xff]
      %v280 = vld [vmem:[%s249 + $0x10] sm:$0xff]
      %v281 = vld [vmem:[%s249 + $0x18] sm:$0xff]
      %v282 = vld [vmem:[%s249 + $0x20] sm:$0xff]
      %v283 = vld [vmem:[%s249 + $0x28] sm:$0xff]
      %v284 = vld [vmem:[%s249 + $0x30] sm:$0xff]
      %v285 = vld [vmem:[%s249 + $0x38] sm:$0xff]
      %v286 = vld [vmem:[%s249 + $0x40] sm:$0xff]
      %v287 = vld [vmem:[%s249 + $0x48] sm:$0xff]
      %v288 = vld [vmem:[%s249 + $0x50] sm:$0x1]
      %v289 = vld [vmem:[%s249 + $0x58] sm:$0x1]
      %v290 = vld [vmem:[%s258] sm:$0x3]
      %v291 = vld [vmem:[%s2] sm:$0xff]
      %v292 = vld [vmem:[%s2 + $0x8] sm:$0xff]
      %v293 = vld [vmem:[%s2 + $0x10] sm:$0xff]
      %v294 = vld [vmem:[%s2 + $0x18] sm:$0xff]
      %v295 = vld [vmem:[%s2 + $0x20] sm:$0xff]
      %v296 = vld [vmem:[%s2 + $0x28] sm:$0x1]
      %vm297 = vcmp.ge.s32.totalorder %v290, 0
      %vm298 = vcmp.lt.s32.totalorder %v290, 41
      %vm299 = vmand %vm297, %vm298
      %v300 = vlaneseq
      %v301 = vshrl.u32 %v300, 7
      %v302 = vadd.s32 %v301, 8
      %v303 = vadd.s32 %v301, 16
      %v304 = vadd.s32 %v301, 24
      %v305 = vadd.s32 %v301, 32
      %v306 = vadd.s32 %v301, 40
      %v307 = vlaneseq
      %v308 = vshrl.u32 %v307, 7
      %v309 = vsub.s32 0, %v308
      %v310 = vrot.slane %v290, %v309
      %v311 = vlaneseq
      %v312 = vshrl.u32 %v311, 7
      %v313 = vsub.s32 1, %v312
      %v314 = vrot.slane %v290, %v313
      %vm315 = vcmp.eq.s32.totalorder %v301, %v310
      %vm316 = vcmp.eq.s32.totalorder %v301, %v314
      %vm317 = vcmp.eq.s32.totalorder %v302, %v310
      %vm318 = vcmp.eq.s32.totalorder %v302, %v314
      %vm319 = vcmp.eq.s32.totalorder %v303, %v310
      %vm320 = vcmp.eq.s32.totalorder %v303, %v314
      %vm321 = vcmp.eq.s32.totalorder %v304, %v310
      %vm322 = vcmp.eq.s32.totalorder %v304, %v314
      %vm323 = vcmp.eq.s32.totalorder %v305, %v310
      %vm324 = vcmp.eq.s32.totalorder %v305, %v314
      %vm325 = vcmp.eq.s32.totalorder %v306, %v310
      %vm326 = vcmp.eq.s32.totalorder %v306, %v314
      %v327 = vsel %vm299, 1, 0
      %v328 = vlaneseq
      %v329 = vshrl.u32 %v328, 7
      %v330 = vsub.s32 0, %v329
      %v331 = vrot.slane %v327, %v330
      %v332 = vlaneseq
      %v333 = vshrl.u32 %v332, 7
      %v334 = vsub.s32 1, %v333
      %v335 = vrot.slane %v327, %v334
      %vm336 = vcmp.eq.s32.totalorder %v331, 1
      %vm337 = vcmp.eq.s32.totalorder %v335, 1
      %vm338 = vmand %vm315, %vm336
      %vm339 = vmand %vm316, %vm337
      %vm340 = vmand %vm317, %vm336
      %vm341 = vmand %vm318, %vm337
      %vm342 = vmand %vm319, %vm336
      %vm343 = vmand %vm320, %vm337
      %vm344 = vmand %vm321, %vm336
      %vm345 = vmand %vm322, %vm337
      %vm346 = vmand %vm323, %vm336
      %vm347 = vmand %vm324, %vm337
      %vm348 = vmand %vm325, %vm336
      %vm349 = vmand %vm326, %vm337
      %v350 = vsel %vm338, 1, 0
      %v351 = vsel %vm339, 1, 0
      %v352 = vsel %vm340, 1, 0
      %v353 = vsel %vm341, 1, 0
      %v354 = vsel %vm342, 1, 0
      %v355 = vsel %vm343, 1, 0
      %v356 = vsel %vm344, 1, 0
      %v357 = vsel %vm345, 1, 0
      %v358 = vsel %vm346, 1, 0
      %v359 = vsel %vm347, 1, 0
      %v360 = vsel %vm348, 1, 0
      %v361 = vsel %vm349, 1, 0
      %v362 = vcvt.s32.f32 %v350
      %v363 = vcvt.s32.f32 %v351
      %v364 = vcvt.s32.f32 %v352
      %v365 = vcvt.s32.f32 %v353
      %v366 = vcvt.s32.f32 %v354
      %v367 = vcvt.s32.f32 %v355
      %v368 = vcvt.s32.f32 %v356
      %v369 = vcvt.s32.f32 %v357
      %v370 = vcvt.s32.f32 %v358
      %v371 = vcvt.s32.f32 %v359
      %v372 = vcvt.s32.f32 %v360
      %v373 = vcvt.s32.f32 %v361
      %v374 = vmax.f32 %v278, %v282
      %v375 = vmax.f32 %v280, %v284
      %v376 = vmax.f32 %v374, %v286
      %vm377 = vcmask 1040384
      %v378 = vsel %vm377, %v288, -inf
      %v379 = vmax.f32 %v375, %v378
      %v380 = vmax.f32 %v376, %v379
      %v381 = vrot.slane %v380, 4
      %v382 = vmax.f32 %v380, %v381
      %v383 = vrot.slane %v382, 2
      %v384 = vmax.f32 %v382, %v383
      %v385 = vrot.slane %v384, 1
      %v386 = vmax.f32 %v384, %v385
      %v387 = vmax.f32 %v279, %v283
      %v388 = vmax.f32 %v281, %v285
      %v389 = vmax.f32 %v387, %v287
      %v390 = vsel %vm377, %v289, -inf
      %v391 = vmax.f32 %v388, %v390
      %v392 = vmax.f32 %v389, %v391
      %v393 = vrot.slane %v392, 4
      %v394 = vmax.f32 %v392, %v393
      %v395 = vrot.slane %v394, 2
      %v396 = vmax.f32 %v394, %v395
      %v397 = vrot.slane %v396, 1
      %v398 = vmax.f32 %v396, %v397
      %v399 = vsub.f32 %v278, %v386
      %v400 = vsub.f32 %v279, %v398
      %v401 = vsub.f32 %v280, %v386
      %v402 = vsub.f32 %v281, %v398
      %v403 = vsub.f32 %v282, %v386
      %v404 = vsub.f32 %v283, %v398
      %v405 = vsub.f32 %v284, %v386
      %v406 = vsub.f32 %v285, %v398
      %v407 = vsub.f32 %v286, %v386
      %v408 = vsub.f32 %v287, %v398
      %v409 = vsub.f32 %v288, %v386
      %v410 = vsub.f32 %v289, %v398
      %v411 = vmul.f32 %v399, 1.442695
      %v412 = vpow.pop %v411
      %v413 = vmul.f32 %v400, 1.442695
      %v414 = vpow.pop %v413
      %v415 = vmul.f32 %v401, 1.442695
      %v416 = vpow.pop %v415
      %v417 = vmul.f32 %v402, 1.442695
      %v418 = vpow.pop %v417
      %v419 = vmul.f32 %v403, 1.442695
      %v420 = vpow.pop %v419
      %v421 = vmul.f32 %v404, 1.442695
      %v422 = vpow.pop %v421
      %v423 = vmul.f32 %v405, 1.442695
      %v424 = vpow.pop %v423
      %v425 = vmul.f32 %v406, 1.442695
      %v426 = vpow.pop %v425
      %v427 = vmul.f32 %v407, 1.442695
      %v428 = vpow.pop %v427
      %v429 = vmul.f32 %v408, 1.442695
      %v430 = vpow.pop %v429
      %v431 = vmul.f32 %v409, 1.442695
      %v432 = vpow.pop %v431
      %v433 = vmul.f32 %v410, 1.442695
      %v434 = vpow.pop %v433
      %v435 = vadd.f32 %v412, %v416
      %v436 = vadd.f32 %v435, %v420
      %v437 = vadd.f32 %v436, %v424
      %v438 = vadd.f32 %v437, %v428
      %v439 = vsel %vm377, %v432, 0.0
      %v440 = vadd.f32 %v438, %v439
      %v441 = vrot.slane %v440, 4
      %v442 = vadd.f32 %v440, %v441
      %v443 = vrot.slane %v442, 2
      %v444 = vadd.f32 %v442, %v443
      %v445 = vrot.slane %v444, 1
      %v446 = vadd.f32 %v444, %v445
      %v447 = vadd.f32 %v414, %v418
      %v448 = vadd.f32 %v447, %v422
      %v449 = vadd.f32 %v448, %v426
      %v450 = vadd.f32 %v449, %v430
      %v451 = vsel %vm377, %v434, 0.0
      %v452 = vadd.f32 %v450, %v451
      %v453 = vrot.slane %v452, 4
      %v454 = vadd.f32 %v452, %v453
      %v455 = vrot.slane %v454, 2
      %v456 = vadd.f32 %v454, %v455
      %v457 = vrot.slane %v456, 1
      %v458 = vadd.f32 %v456, %v457
      %v459 = vlog2.pop %v446
      %v460 = vmul.f32 %v459, 0.6931472
      %v461 = vlog2.pop %v458
      %v462 = vmul.f32 %v461, 0.6931472
      %v463 = vadd.f32 %v386, %v460
      %v464 = vadd.f32 %v398, %v462
      %v465 = vmul.f32 %v278, %v362
      %v466 = vmul.f32 %v279, %v363
      %v467 = vmul.f32 %v280, %v364
      %v468 = vmul.f32 %v281, %v365
      %v469 = vmul.f32 %v282, %v366
      %v470 = vmul.f32 %v283, %v367
      %v471 = vmul.f32 %v284, %v368
      %v472 = vmul.f32 %v285, %v369
      %v473 = vmul.f32 %v286, %v370
      %v474 = vmul.f32 %v287, %v371
      %v475 = vmul.f32 %v288, %v372
      %v476 = vmul.f32 %v289, %v373
      %v477 = vadd.f32 %v465, %v467
      %v478 = vadd.f32 %v477, %v469
      %v479 = vadd.f32 %v478, %v471
      %v480 = vadd.f32 %v479, %v473
      %v481 = vsel %vm377, %v475, 0.0
      %v482 = vadd.f32 %v480, %v481
      %v483 = vrot.slane %v482, 4
      %v484 = vadd.f32 %v482, %v483
      %v485 = vrot.slane %v484, 2
      %v486 = vadd.f32 %v484, %v485
      %v487 = vrot.slane %v486, 1
      %v488 = vadd.f32 %v486, %v487
      %v489 = vadd.f32 %v466, %v468
      %v490 = vadd.f32 %v489, %v470
      %v491 = vadd.f32 %v490, %v472
      %v492 = vadd.f32 %v491, %v474
      %v493 = vsel %vm377, %v476, 0.0
      %v494 = vadd.f32 %v492, %v493
      %v495 = vrot.slane %v494, 4
      %v496 = vadd.f32 %v494, %v495
      %v497 = vrot.slane %v496, 2
      %v498 = vadd.f32 %v496, %v497
      %v499 = vrot.slane %v498, 1
      %v500 = vadd.f32 %v498, %v499
      %502 = vset.pattern.permute.xlu0 0
      %503 = vperm.xlu0 %502, %v291
      %v504 = vpop.permute.xlu0 %503
      %507 = vset.pattern.permute.xlu0 0
      %508 = vperm.xlu0 %507, %v292
      %v509 = vpop.permute.xlu0 %508
      %512 = vset.pattern.permute.xlu0 0
      %513 = vperm.xlu0 %512, %v293
      %v514 = vpop.permute.xlu0 %513
      %517 = vset.pattern.permute.xlu0 0
      %518 = vperm.xlu0 %517, %v294
      %v519 = vpop.permute.xlu0 %518
      %522 = vset.pattern.permute.xlu0 0
      %523 = vperm.xlu0 %522, %v295
      %v524 = vpop.permute.xlu0 %523
      %527 = vset.pattern.permute.xlu0 0
      %528 = vperm.xlu0 %527, %v296
      %v529 = vpop.permute.xlu0 %528
      %v531 = vmul.f32 %v504, %v362
      %v532 = vmul.f32 %v504, %v363
      %v533 = vmul.f32 %v509, %v364
      %v534 = vmul.f32 %v509, %v365
      %v535 = vmul.f32 %v514, %v366
      %v536 = vmul.f32 %v514, %v367
      %v537 = vmul.f32 %v519, %v368
      %v538 = vmul.f32 %v519, %v369
      %v539 = vmul.f32 %v524, %v370
      %v540 = vmul.f32 %v524, %v371
      %v541 = vmul.f32 %v529, %v372
      %v542 = vmul.f32 %v529, %v373
      %v543 = vadd.f32 %v531, %v533
      %v544 = vadd.f32 %v543, %v535
      %v545 = vadd.f32 %v544, %v537
      %v546 = vadd.f32 %v545, %v539
      %v547 = vsel %vm377, %v541, 0.0
      %v548 = vadd.f32 %v546, %v547
      %v549 = vrot.slane %v548, 4
      %v550 = vadd.f32 %v548, %v549
      %v551 = vrot.slane %v550, 2
      %v552 = vadd.f32 %v550, %v551
      %v553 = vrot.slane %v552, 1
      %v554 = vadd.f32 %v552, %v553
      %v555 = vadd.f32 %v532, %v534
      %v556 = vadd.f32 %v555, %v536
      %v557 = vadd.f32 %v556, %v538
      %v558 = vadd.f32 %v557, %v540
      %v559 = vsel %vm377, %v542, 0.0
      %v560 = vadd.f32 %v558, %v559
      %v561 = vrot.slane %v560, 4
      %v562 = vadd.f32 %v560, %v561
      %v563 = vrot.slane %v562, 2
      %v564 = vadd.f32 %v562, %v563
      %v565 = vrot.slane %v564, 1
      %v566 = vadd.f32 %v564, %v565
      %v567 = vld [vmem:[%s263] sm:$0x3]
      %v568 = vsub.f32 %v463, %v488
      %v569 = vsub.f32 %v464, %v500
      %v570 = vmul.f32 %v554, %v568
      %v571 = vmul.f32 %v566, %v569
      %v574 = vcombine.low %v570, %v571
      %v576 = vunpack.c.l.s4 1966171168
      %v577 = vunpack.c.0.s8 %v576
      %v578 = vlaneseq
      %v579 = vshrl.u32 %v578, 7
      %v580 = vsub.s32 %v577, %v579
      %v581 = vrot.slane %v574, %v580
      %v583 = vunpack.c.l.s4 1966171168
      %v584 = vunpack.c.0.s8 %v583
      %v585 = vlaneseq
      %v586 = vshrl.u32 %v585, 7
      %v587 = vsub.s32 %v584, %v586
      %v588 = vrot.slane %v581, %v587
      %v590 = vadd.f32 %v567, %v588
      %v591 = vlaneseq
      %vm592 = vcmp.ge.s32.totalorder %v591, 0
      %vm593 = vcmp.lt.s32.totalorder %v591, 256
      %vm594 = vmand %vm592, %vm593
      %595 = vst.msk [vmem:[%s263] sm:$0x3] %vm594, %v590
      %v596 = vld [vmem:[%s267] sm:$0x3]
      %v599 = vcombine.low %v554, %v566
      %v601 = vunpack.c.l.s4 1966171168
      %v602 = vunpack.c.0.s8 %v601
      %v603 = vlaneseq
      %v604 = vshrl.u32 %v603, 7
      %v605 = vsub.s32 %v602, %v604
      %v606 = vrot.slane %v599, %v605
      %v608 = vunpack.c.l.s4 1966171168
      %v609 = vunpack.c.0.s8 %v608
      %v610 = vlaneseq
      %v611 = vshrl.u32 %v610, 7
      %v612 = vsub.s32 %v609, %v611
      %v613 = vrot.slane %v606, %v612
      %v615 = vadd.f32 %v596, %v613
      %616 = vst.msk [vmem:[%s267] sm:$0x3] %vm594, %v615
      %p617 = scmp.lt.s32.totalorder %s20, 1
      %s618 = scalar_select %p617, %s20, 1
      %s619 = smul.addr %s618, 2
      %s620 = scalar_lea.vmem %s3, %s619
      %p621 = scmp.lt.s32.totalorder %s20, 1
      %s622 = scalar_select %p621, %s20, 1
      %s623 = smul.addr %s622, 2
      %s624 = scalar_lea.vmem %s4, %s623
      // Predicated region
      $region37: #{seg_cross_entropy_metric.1} parent=31 // pred_check
        %p625 = pneg %p123
      $region38: #{seg_cross_entropy_metric.1} parent=31 // pred_check_branch
        %627 = sbr.rel (%p625) target = $region40
      $region39: #{seg_cross_entropy_metric.1} parent=31 // pred_region
        _
      $region40: #{seg_cross_entropy_metric.1} parent=31 // pred_fallthru
        _
      // Predicated region
      $region41: #{seg_cross_entropy_metric.1} parent=31 // pred_check
        %p628 = pneg %p149
      $region42: #{seg_cross_entropy_metric.1} parent=31 // pred_check_branch
        %630 = sbr.rel (%p628) target = $region44
      $region43: #{seg_cross_entropy_metric.1} parent=31 // pred_region
        _
      $region44: #{seg_cross_entropy_metric.1} parent=31 // pred_fallthru
        _
    $region32: #{seg_cross_entropy_metric.1} parent=5 // pred_fallthru
      _
    %p631 = scmp.le.s32.totalorder 2, %s11
    // Predicated region
    $region45: #{seg_cross_entropy_metric.1} parent=5 // pred_check
      %p632 = pneg %p631
    $region46: #{seg_cross_entropy_metric.1} parent=5 // pred_check_branch
      %634 = sbr.rel (%p632) target = $region48
    $region47: #{seg_cross_entropy_metric.1} parent=5 // pred_region
      %s635 = ssub.s32 %s11, 2
      // Predicated region
      $region49: #{seg_cross_entropy_metric.1} parent=47 // pred_check
        %p636 = pneg %p129
      $region50: #{seg_cross_entropy_metric.1} parent=47 // pred_check_branch
        %638 = sbr.rel (%p636) target = $region52
      $region51: #{seg_cross_entropy_metric.1} parent=47 // pred_region
        %p639 = scmp.lt.s32.totalorder %s22, 1
        %s640 = scalar_select %p639, %s22, 1
        %s641 = smul.addr %s640, 2
        %s642 = scalar_lea.vmem %s3, %s641
      $region52: #{seg_cross_entropy_metric.1} parent=47 // pred_fallthru
        _
      // Predicated region
      $region53: #{seg_cross_entropy_metric.1} parent=47 // pred_check
        %p643 = pneg %p155
      $region54: #{seg_cross_entropy_metric.1} parent=47 // pred_check_branch
        %645 = sbr.rel (%p643) target = $region56
      $region55: #{seg_cross_entropy_metric.1} parent=47 // pred_region
        %p646 = scmp.lt.s32.totalorder %s22, 1
        %s647 = scalar_select %p646, %s22, 1
        %s648 = smul.addr %s647, 2
        %s649 = scalar_lea.vmem %s4, %s648
      $region56: #{seg_cross_entropy_metric.1} parent=47 // pred_fallthru
        _
    $region48: #{seg_cross_entropy_metric.1} parent=5 // pred_fallthru
      _
  $region6: #{seg_cross_entropy_metric.1} parent=0 // loop_footer
    %s15 = sadd.s32 1, %s11
  $region7: #{seg_cross_entropy_metric.1} parent=0 // loop_footer_branch
    %10 = sbr.rel target = $region3
  $region8: #{seg_cross_entropy_metric.1} parent=0 // loop_exit
    _

</llo_original>
